<compile_context>
chip_gen: v5e
topology: v5e:2x2
jax: 0.10.0
libtpu: 0.0.40
codegen_flags: <defaults>
</compile_context>

<pallas_src>
import jax
import jax.numpy as jnp
from jax.experimental import pallas as pl
from jax.experimental.pallas import tpu as pltpu


def _conv_pool_kernel(w_ref, x_ref, o_ref):
    # w_ref: SMEM (4,) f32 = [w0, w1, w2, bias]   (Conv1d(1,1,3) weight + bias)
    # x_ref: VMEM (2, Hp) f32 ; row 0 = x[0::2] (even phase), row 1 = x[1::2] (odd phase)
    # o_ref: VMEM (1, Hp) f32 ; valid outputs are lanes [0, P); the padded tail is
    #                           garbage and sliced off by the wrapper.
    Hp = x_ref.shape[1]
    w0 = w_ref[0]
    w1 = w_ref[1]
    w2 = w_ref[2]
    b = w_ref[3]

    x = x_ref[...]                          # (2, Hp)
    # Shift each phase left by one lane: xs[r, j] = x[r, j + 1] (wraps only into the
    # padded/discarded tail).  Shift Hp-1 == -1 (mod Hp); XLU lane rotate, ~free slot.
    xs = pltpu.roll(x, Hp - 1, axis=1)      # (2, Hp)

    e, o = x[0:1, :], x[1:2, :]             # x[2j],     x[2j+1]
    e1, o1 = xs[0:1, :], xs[1:2, :]         # x[2j+2],   x[2j+3]

    even = w0 * e + w1 * o + w2 * e1        # conv output at position 2j   (sans bias)
    odd = w0 * o + w1 * e1 + w2 * o1        # conv output at position 2j+1 (sans bias)

    # MaxPool1d(kernel=2, stride=2); bias added once, after the max.
    o_ref[...] = jnp.maximum(even, odd) + b


def conv_pool_pallas(x_phases, conv_w, conv_b):
    """x_phases: (2, Hp) f32 (even/odd de-interleave, lane-padded) -> (1, Hp) f32."""
    Hp = x_phases.shape[1]
    w_packed = jnp.concatenate(
        [jnp.asarray(conv_w, jnp.float32).reshape(3),
         jnp.asarray(conv_b, jnp.float32).reshape(1)])
    # TODO(synk): for long sequences / batches, add a 1-D 'parallel' grid over the lane
    # dim with a 1-lane halo per phase instead of a single whole-array block.
    return pl.pallas_call(
        _conv_pool_kernel,
        out_shape=jax.ShapeDtypeStruct((1, Hp), jnp.float32),
        in_specs=[
            pl.BlockSpec(memory_space=pltpu.SMEM),   # conv taps + bias (scalars)
            pl.BlockSpec(memory_space=pltpu.VMEM),   # de-interleaved signal
        ],
        out_specs=pl.BlockSpec(memory_space=pltpu.VMEM),
    )(w_packed, x_phases)


def encoder_cnn_forward(params, input_ids, lang, hidden):
    """Mirrors EncoderCNN.forward(input, lang, hidden). `lang`/`hidden` are unused
    (they are unused in the PyTorch forward as well)."""
    del lang, hidden
    # Embedding lookup (glue: simple gather) + .view(1, 1, -1) flatten.
    # TODO(synk): for long sequences, fuse this gather into the kernel via
    # PrefetchScalarGridSpec + a row-gather BlockSpec instead of materializing it in HBM.
    embedded = jnp.take(params["embedding"], input_ids, axis=0)        # (seq, hidden)
    x = embedded.reshape(-1).astype(jnp.float32)                       # (N,)
    N = x.shape[0]
    P = (N - 2) // 2                                                   # conv 'valid' -> pool(2,2)

    # Free layout plumbing: de-interleave into even/odd phases and pad the lane dim to a
    # multiple of 128 so every in-kernel op and the output store is lane-dense/unmasked.
    H = (N + 1) // 2
    Hp = ((H + 127) // 128) * 128
    x_pad = jnp.zeros((2 * Hp,), jnp.float32).at[:N].set(x)
    x_phases = jnp.stack([x_pad[0::2], x_pad[1::2]], axis=0)           # (2, Hp)

    out = conv_pool_pallas(x_phases, params["conv_w"], params["conv_b"])  # (1, Hp)
    out = out[:, :P].reshape(1, 1, P)                                  # NCL, like PyTorch
    return out, out


def _reference(params, input_ids):
    embedded = jnp.take(params["embedding"], input_ids, axis=0).reshape(-1)
    w = params["conv_w"]
    b = params["conv_b"]
    conv = w[0] * embedded[:-2] + w[1] * embedded[1:-1] + w[2] * embedded[2:] + b
    P = conv.shape[0] // 2
    return jnp.maximum(conv[0:2 * P:2], conv[1:2 * P:2]).reshape(1, 1, -1)


if __name__ == "__main__":
    n_letters = 32
    lang_num = 4        # unused by forward, kept for fidelity
    hidden_size = 32
    seq_len = 8

    key = jax.random.PRNGKey(0)
    k_emb, k_w, k_b, k_in, k_hid = jax.random.split(key, 5)

    params = {
        # nn.Embedding(n_letters, hidden_size): weight ~ N(0, 1)
        "embedding": jax.random.normal(k_emb, (n_letters, hidden_size), jnp.float32),
        # nn.Conv1d(1, 1, 3): weight (1,1,3), bias (1,) -> stored flat
        "conv_w": (jax.random.uniform(k_w, (3,), jnp.float32) - 0.5) * (2.0 / 3.0 ** 0.5),
        "conv_b": (jax.random.uniform(k_b, (1,), jnp.float32)[0] - 0.5) * (2.0 / 3.0 ** 0.5),
    }

    input_ids = jax.random.randint(k_in, (seq_len,), 0, n_letters, jnp.int32)
    lang = jnp.zeros((1,), jnp.int32)                          # unused
    hidden0 = jax.random.normal(k_hid, (1, 1, hidden_size))    # unused

    out, out2 = encoder_cnn_forward(params, input_ids, lang, hidden0)
    out = jax.block_until_ready(out)

    ref = _reference(params, input_ids)
    assert out.shape == ref.shape == (1, 1, (seq_len * hidden_size - 2) // 2), out.shape
    assert jnp.allclose(out, ref, atol=1e-5, rtol=1e-5), "mismatch vs reference"
    assert jnp.array_equal(out, out2)

    print("KERNEL_OK")
</pallas_src>

<mosaic_0001>
module attributes {stable_mosaic.version = 11 : i64} {
  func.func @_conv_pool_kernel(%arg0: memref<4xf32, #tpu.memory_space<smem>>, %arg1: memref<2x128xf32, #tpu.memory_space<vmem>>, %arg2: memref<1x128xf32, #tpu.memory_space<vmem>>) attributes {dimension_semantics = [], scalar_prefetch = 0 : i64, scratch_operands = 0 : i64, tpu.core_type = #tpu.core_type<tc>} {
    %c0 = arith.constant 0 : index
    %0 = memref.load %arg0[%c0] : memref<4xf32, #tpu.memory_space<smem>>
    %c1 = arith.constant 1 : index
    %1 = memref.load %arg0[%c1] : memref<4xf32, #tpu.memory_space<smem>>
    %c2 = arith.constant 2 : index
    %2 = memref.load %arg0[%c2] : memref<4xf32, #tpu.memory_space<smem>>
    %c3 = arith.constant 3 : index
    %3 = memref.load %arg0[%c3] : memref<4xf32, #tpu.memory_space<smem>>
    %c0_0 = arith.constant 0 : index
    %c0_1 = arith.constant 0 : index
    %4 = vector.load %arg1[%c0_0, %c0_1] : memref<2x128xf32, #tpu.memory_space<vmem>>, vector<2x128xf32>
    %c127_i32 = arith.constant 127 : i32
    %5 = tpu.dynamic_rotate %4 by %c127_i32 dim 1 : vector<2x128xf32>, i32 -> vector<2x128xf32>
    %6 = vector.extract_strided_slice %4 {offsets = [0, 0], sizes = [1, 128], strides = [1, 1]} : vector<2x128xf32> to vector<1x128xf32>
    %7 = vector.extract_strided_slice %4 {offsets = [1, 0], sizes = [1, 128], strides = [1, 1]} : vector<2x128xf32> to vector<1x128xf32>
    %8 = vector.extract_strided_slice %5 {offsets = [0, 0], sizes = [1, 128], strides = [1, 1]} : vector<2x128xf32> to vector<1x128xf32>
    %9 = vector.extract_strided_slice %5 {offsets = [1, 0], sizes = [1, 128], strides = [1, 1]} : vector<2x128xf32> to vector<1x128xf32>
    %10 = vector.broadcast %0 : f32 to vector<1x128xf32>
    %11 = arith.mulf %10, %6 : vector<1x128xf32>
    %12 = vector.broadcast %1 : f32 to vector<1x128xf32>
    %13 = arith.mulf %12, %7 : vector<1x128xf32>
    %14 = arith.addf %11, %13 : vector<1x128xf32>
    %15 = vector.broadcast %2 : f32 to vector<1x128xf32>
    %16 = arith.mulf %15, %8 : vector<1x128xf32>
    %17 = arith.addf %14, %16 : vector<1x128xf32>
    %18 = vector.broadcast %0 : f32 to vector<1x128xf32>
    %19 = arith.mulf %18, %7 : vector<1x128xf32>
    %20 = vector.broadcast %1 : f32 to vector<1x128xf32>
    %21 = arith.mulf %20, %8 : vector<1x128xf32>
    %22 = arith.addf %19, %21 : vector<1x128xf32>
    %23 = vector.broadcast %2 : f32 to vector<1x128xf32>
    %24 = arith.mulf %23, %9 : vector<1x128xf32>
    %25 = arith.addf %22, %24 : vector<1x128xf32>
    %26 = arith.maximumf %17, %25 : vector<1x128xf32>
    %27 = vector.broadcast %3 : f32 to vector<1x128xf32>
    %28 = arith.addf %26, %27 : vector<1x128xf32>
    %c0_2 = arith.constant 0 : index
    %c0_3 = arith.constant 0 : index
    %29 = vector.load %arg2[%c0_2, %c0_3] : memref<1x128xf32, #tpu.memory_space<vmem>>, vector<1x128xf32>
    tpu.vector_store %arg2[%c0_2, %c0_3], %28 {strides = array<i32>} : memref<1x128xf32, #tpu.memory_space<vmem>>, vector<1x128xf32>,
    return
  }
}

</mosaic_0001>

<llo_original>
// kernel: tpu_custom_call.1
$region0: #{tpu_custom_call.1}
  #allocation0 [shape = 'u32[]', space=smem, size = 0x4, offset = 0x4, fixed_abs, tag = 'smem constant byte address 0x4 - core index']
  #allocation1 [shape = 'u32[72,128]{1,0:T(1,128)}', space=vmem, size = 0x9000, scoped, tag = 'internal scratch']
  %s0 = inlined_call_operand.hbm [shape: f32[4], index: 0, kind: input, shape index: {}]
  %s1 = inlined_call_operand.hbm [shape: f32[2,128], index: 1, kind: input, shape index: {}]
  %s2 = inlined_call_operand.hbm [shape: f32[1,128], index: 2, kind: output, shape index: {}]
  %s3 = sld [smem:[#allocation0]]
  $region26: #{tpu_custom_call.1} parent=0
    _
  %s5 = ssub.s32 1, %s3
  %s6 = scalar_select 0, %s5, %s3
  $region1: #{tpu_custom_call.1} parent=0
    #allocation2 [shape = 'u8[512]{0}', space=smem, size = 0x200, scoped, tag = 'input window, operand 0, single buffered']
    #allocation3 [shape = 's32[1]{0}', space=sflag, size = 0x4, scoped, tag = 'scoped memory for tpu_custom_call.1']
    #allocation4 [shape = 's32[1]{0}', space=sflag, size = 0x4, scoped, tag = 'scoped memory for tpu_custom_call.1']
    #allocation5 [shape = 's32[1]{0}', space=sflag, size = 0x4, scoped, tag = 'scoped memory for tpu_custom_call.1']
    #allocation6 [shape = 'u8[1024]{0}', space=vmem, size = 0x400, scoped, tag = 'input window, operand 1, single buffered']
    #allocation7 [shape = 'u8[512]{0}', space=vmem, size = 0x400, scoped, tag = 'output window, operand 0, single buffered']
    %7 = vsyncpa [#allocation5], 0
    %8 = vsyncpa [#allocation3], 0
    %9 = vsyncpa [#allocation4], 0
    // Predicated region
    $region2: #{tpu_custom_call.1} parent=1 // pred_check
      _
    $region3: #{tpu_custom_call.1} parent=1 // pred_check_branch
      %11 = sbr.rel (0) target = $region5
    $region4: #{tpu_custom_call.1} parent=1 // pred_region
      %13 = vsyncadd [#allocation5], 0
      %s15 = sshll.u32 %s0, 4
      %s16 = int_to_ptr.hbm [resolvable:$true] %s15
      %18 = dma.hbm_to_smem %s16, 16, [#allocation2], [#allocation5]
    $region5: #{tpu_custom_call.1} parent=1 // pred_fallthru
      _
    // Predicated region
    $region6: #{tpu_custom_call.1} parent=1 // pred_check
      _
    $region7: #{tpu_custom_call.1} parent=1 // pred_check_branch
      %20 = sbr.rel (0) target = $region9
    $region8: #{tpu_custom_call.1} parent=1 // pred_region
      %22 = vsyncadd [#allocation3], 0
      %s24 = sshll.u32 %s1, 4
      %s25 = int_to_ptr.hbm [resolvable:$true] %s24
      %s26 = sshll.u32 [#allocation6], 4
      %s27 = int_to_ptr.vmem [resolvable:$true] %s26
      %29 = dma.hbm_to_vmem [thread:$0]  %s25, 32, %s27, [#allocation3]
    $region9: #{tpu_custom_call.1} parent=1 // pred_fallthru
      _
    // Predicated region
    $region10: #{tpu_custom_call.1} parent=1 // pred_check
      _
    $region11: #{tpu_custom_call.1} parent=1 // pred_check_branch
      %31 = sbr.rel (0) target = $region13
    $region12: #{tpu_custom_call.1} parent=1 // pred_region
      %33 = dma.done [#allocation5], 16
    $region13: #{tpu_custom_call.1} parent=1 // pred_fallthru
      _
    // Predicated region
    $region14: #{tpu_custom_call.1} parent=1 // pred_check
      _
    $region15: #{tpu_custom_call.1} parent=1 // pred_check_branch
      %35 = sbr.rel (0) target = $region17
    $region16: #{tpu_custom_call.1} parent=1 // pred_region
      %37 = dma.done [#allocation3], 32
    $region17: #{tpu_custom_call.1} parent=1 // pred_fallthru
      _
    %38 = sfence
    %s39 = sld [smem:[#allocation2]]
    %s40 = sld [smem:[#allocation2 + $0x1]]
    %s41 = sld [smem:[#allocation2 + $0x2]]
    %s42 = sld [smem:[#allocation2 + $0x3]]
    %v43 = vld [vmem:[#allocation6] sm:$0x3]
    %44 = vrot.lane.b32.xlu0 %v43, 127
    %v45 = vpop.permute.xlu0 %44
    %v46 = vstv %s39
    %v47 = vmul.f32 %v46, %v43
    %v48 = vstv %s40
    %v49 = vmul.f32 %v48, %v43
    %v51 = vrot.slane %v49, 1
    %v53 = vadd.f32 %v47, %v51
    %v54 = vstv %s41
    %v55 = vmul.f32 %v54, %v45
    %v56 = vadd.f32 %v53, %v55
    %v57 = vmul.f32 %v48, %v45
    %v59 = vrot.slane %v57, 7
    %v61 = vadd.f32 %v47, %v59
    %v62 = vadd.f32 %v61, %v55
    %v64 = vrot.slane %v62, 1
    %v66 = vmax.f32 %v56, %v64
    %v67 = vstv %s42
    %v68 = vadd.f32 %v66, %v67
    %69 = vst [vmem:[#allocation7] sm:$0x1] %v68
    // Predicated region
    $region18: #{tpu_custom_call.1} parent=1 // pred_check
      _
    $region19: #{tpu_custom_call.1} parent=1 // pred_check_branch
      %71 = sbr.rel (0) target = $region21
    $region20: #{tpu_custom_call.1} parent=1 // pred_region
      %73 = vsyncadd [#allocation4], 0
      %s75 = sshll.u32 [#allocation7], 4
      %s76 = int_to_ptr.vmem [resolvable:$true] %s75
      %s77 = sshll.u32 %s2, 4
      %s78 = int_to_ptr.hbm [resolvable:$true] %s77
      %80 = dma.vmem_to_hbm [thread:$0]  %s76, 16, %s78, [#allocation4]
    $region21: #{tpu_custom_call.1} parent=1 // pred_fallthru
      _
    // Predicated region
    $region22: #{tpu_custom_call.1} parent=1 // pred_check
      _
    $region23: #{tpu_custom_call.1} parent=1 // pred_check_branch
      %82 = sbr.rel (0) target = $region25
    $region24: #{tpu_custom_call.1} parent=1 // pred_region
      %84 = dma.done [#allocation4], 16
    $region25: #{tpu_custom_call.1} parent=1 // pred_fallthru
      _
    %85 = vsyncpa [#allocation3], 1
    %86 = vsyncpa [#allocation4], 1
    %87 = vsyncpa [#allocation5], 1

</llo_original>
